<compile_context>
chip_gen: v7x
topology: tpu7x:2x2x1
jax: 0.10.0
libtpu: 0.0.40
codegen_flags: <defaults>
</compile_context>

<pallas_src>
import functools

import jax
import jax.numpy as jnp
from jax import lax
from jax.experimental import pallas as pl
from jax.experimental.pallas import tpu as pltpu


def _vmem_budget_bytes() -> int:
    """~75% of physical VMEM (≈48 MiB on v7x, ≈96 MiB on v5e/v6e)."""
    cap = 128 * 1024 * 1024
    try:
        info = pltpu.get_tpu_info()
        cap_attr = getattr(info, "vmem_capacity_bytes", None)
        if cap_attr:
            cap = int(cap_attr)
    except Exception:
        pass
    return int(cap * 0.75)


def _pick_support_tile(S, Lt, Ls, D, rep_bytes, out_bytes, budget) -> int:
    """Largest divisor of S whose double-buffered block fits the VMEM budget."""
    per_s = ((Lt * D + Ls * D) * rep_bytes      # test + support reps rows
             + Ls * rep_bytes                   # support mask rows
             + Lt * Ls * out_bytes)             # output rows
    fixed = Lt * rep_bytes                      # test mask (not tiled over S)
    for tS in sorted({d for d in range(1, S + 1) if S % d == 0}, reverse=True):
        if 2 * (tS * per_s + fixed) <= budget:  # x2: BlockSpec double-buffering
            return tS
    return 1


def _matching_sim_kernel(test_ref, supp_ref, tmask_ref, smask_ref, out_ref,
                         *, pre_mask_t: bool):
    """One grid step == one (batch, support-tile) pair.

    test_ref : (1, tS, Lt, D)   VMEM, native reps dtype
    supp_ref : (1, tS, Ls, D)   VMEM, native reps dtype
    tmask_ref: (1, Lt, 1)       VMEM, reps dtype 0/1 mask (shared across S)
    smask_ref: (1, tS, Ls, 1)   VMEM, reps dtype 0/1 mask
    out_ref  : (1, tS, Lt, Ls)  VMEM, out dtype
    """
    t = test_ref[0]                       # (tS, Lt, D)
    s = supp_ref[0]                       # (tS, Ls, D)
    sm = smask_ref[0]                     # (tS, Ls, 1)
    tm = tmask_ref[0]                     # (Lt, 1)

    # Mask support reps before the contraction (VPU broadcast over the lane
    # axis D); mask already in reps dtype, 0/1 values are exact.
    s_masked = s * sm

    if pre_mask_t:
        # Fold the test mask into the LHS: cheaper than a post-matmul f32
        # pass over the full (tS, Lt, Ls) output whenever D is not much
        # larger than Ls.
        t = t * tm[None, :, :]

    # Batched MXU matmul contracting on D (last dim of both operands),
    # batch dim 0: (tS, Lt, D) x (tS, Ls, D) -> (tS, Lt, Ls), f32 accumulation.
    sim = lax.dot_general(
        t, s_masked,
        dimension_numbers=(((2,), (2,)), ((0,), (0,))),
        preferred_element_type=jnp.float32,
    )

    if not pre_mask_t:
        sim = sim * tm[None, :, :].astype(jnp.float32)

    out_ref[0] = sim.astype(out_ref.dtype)


def matching_similarity_scorer(test_reps, support_reps,
                               test_output_mask, support_output_mask,
                               support_targets=None, label_reps=None,
                               out_dtype=jnp.float32):
    """JAX/Pallas equivalent of MatchingSimilarityScorer.forward (reps_dot).

    Returns: (B, S, Lt, Ls) similarity matrix (out_dtype, default float32).
    """
    B, S, Lt, D = test_reps.shape
    Ls = support_reps.shape[-2]

    rep_dtype = test_reps.dtype
    rep_bytes = jnp.dtype(rep_dtype).itemsize
    out_bytes = jnp.dtype(out_dtype).itemsize

    # Masks in the reps dtype (no in-kernel cast, half the mask DMA for bf16).
    tmask = test_output_mask.astype(rep_dtype).reshape(B, Lt, 1)
    smask = support_output_mask.astype(rep_dtype).reshape(B, S, Ls, 1)

    # Static masking-strategy choice (see review): pre-mask the LHS when the
    # extra D-wide multiplies are cheaper than a full-output f32 pass.
    premask_thresh = 2 * Ls if rep_bytes < 4 else Ls
    pre_mask_t = D < premask_thresh

    # Per-generation VMEM budgeting: pick the largest support tile that keeps
    # the double-buffered block inside ~75% of physical VMEM.
    budget = _vmem_budget_bytes()
    tS = _pick_support_tile(S, Lt, Ls, D, rep_bytes, out_bytes, budget)
    grid = (B, S // tS)

    cost = pl.CostEstimate(
        flops=2 * B * S * Lt * Ls * D,
        transcendentals=0,
        bytes_accessed=((B * S * Lt * D + B * S * Ls * D) * rep_bytes
                        + (B * Lt + B * S * Ls) * rep_bytes
                        + B * S * Lt * Ls * out_bytes),
    )

    kernel = functools.partial(_matching_sim_kernel, pre_mask_t=pre_mask_t)

    out = pl.pallas_call(
        kernel,
        out_shape=jax.ShapeDtypeStruct((B, S, Lt, Ls), out_dtype),
        grid_spec=pltpu.PrefetchScalarGridSpec(
            num_scalar_prefetch=0,
            grid=grid,
            in_specs=[
                pl.BlockSpec((1, tS, Lt, D), lambda b, si: (b, si, 0, 0)),
                pl.BlockSpec((1, tS, Ls, D), lambda b, si: (b, si, 0, 0)),
                pl.BlockSpec((1, Lt, 1), lambda b, si: (b, 0, 0)),
                pl.BlockSpec((1, tS, Ls, 1), lambda b, si: (b, si, 0, 0)),
            ],
            out_specs=pl.BlockSpec((1, tS, Lt, Ls), lambda b, si: (b, si, 0, 0)),
        ),
        compiler_params=pltpu.CompilerParams(
            dimension_semantics=("parallel", "parallel"),
            vmem_limit_bytes=budget),
        cost_estimate=cost,
    )(test_reps, support_reps, tmask, smask)

    return out


def _reference(test_reps, support_reps, test_output_mask, support_output_mask):
    """Pure-JAX reference mirroring the PyTorch forward, for validation."""
    B, S, Lt, D = test_reps.shape
    Ls = support_reps.shape[-2]
    t = test_reps.reshape(B * S, Lt, D).astype(jnp.float32)
    s = support_reps.reshape(B * S, Ls, D).astype(jnp.float32)
    sim = jnp.einsum('ntd,nsd->nts', t, s)
    m1 = jnp.broadcast_to(test_output_mask[:, None, :], (B, S, Lt)
                          ).reshape(B * S, Lt).astype(jnp.float32)
    m2 = support_output_mask.reshape(B * S, Ls).astype(jnp.float32)
    mask = jnp.einsum('nt,ns->nts', m1, m2)
    return (sim * mask).reshape(B, S, Lt, Ls)


if __name__ == "__main__":
    # Small shapes consistent with the module's forward signature.
    B, S, Lt, Ls, D = 2, 2, 8, 8, 32

    key = jax.random.PRNGKey(0)
    k1, k2, k3, k4 = jax.random.split(key, 4)

    test_reps = jax.random.normal(k1, (B, S, Lt, D), dtype=jnp.float32)
    support_reps = jax.random.normal(k2, (B, S, Ls, D), dtype=jnp.float32)
    # binary 0/1 output masks (pad tokens masked out)
    test_output_mask = (jax.random.uniform(k3, (B, Lt)) > 0.25).astype(jnp.float32)
    support_output_mask = (jax.random.uniform(k4, (B, S, Ls)) > 0.25).astype(jnp.float32)

    sim = matching_similarity_scorer(test_reps, support_reps,
                                     test_output_mask, support_output_mask)
    sim = jax.block_until_ready(sim)

    ref = _reference(test_reps, support_reps, test_output_mask, support_output_mask)
    assert sim.shape == (B, S, Lt, Ls)
    # Tolerance assumes f32 reps (as constructed above); bf16 reps would need
    # a looser tolerance even though the kernel remains correct.
    assert jnp.allclose(sim, ref, atol=1e-5, rtol=1e-5), "mismatch vs reference"

    print("KERNEL_OK")
</pallas_src>

<mosaic_0001>
module attributes {stable_mosaic.version = 11 : i64} {
  func.func @_matching_sim_kernel(%arg0: i32, %arg1: i32, %arg2: memref<1x2x8x32xf32, #tpu.memory_space<vmem>>, %arg3: memref<1x2x8x32xf32, #tpu.memory_space<vmem>>, %arg4: memref<1x8x1xf32, #tpu.memory_space<vmem>>, %arg5: memref<1x2x8x1xf32, #tpu.memory_space<vmem>>, %arg6: memref<1x2x8x8xf32, #tpu.memory_space<vmem>>) attributes {dimension_semantics = [#tpu.dimension_semantics<parallel>, #tpu.dimension_semantics<parallel>], iteration_bounds = array<i64: 2, 1>, scalar_prefetch = 0 : i64, scratch_operands = 0 : i64, tpu.core_type = #tpu.core_type<tc>, window_params = [{transform_indices = @transform_0, window_bounds = array<i64: 1, 2, 8, 32>}, {transform_indices = @transform_1, window_bounds = array<i64: 1, 2, 8, 32>}, {transform_indices = @transform_2, window_bounds = array<i64: 1, 8, 1>}, {transform_indices = @transform_3, window_bounds = array<i64: 1, 2, 8, 1>}, {transform_indices = @transform_4, window_bounds = array<i64: 1, 2, 8, 8>}]} {
    %c0 = arith.constant 0 : index
    %c0_0 = arith.constant 0 : index
    %c0_1 = arith.constant 0 : index
    %c0_2 = arith.constant 0 : index
    %0 = vector.load %arg2[%c0, %c0_0, %c0_1, %c0_2] : memref<1x2x8x32xf32, #tpu.memory_space<vmem>>, vector<1x2x8x32xf32>
    %1 = vector.shape_cast %0 : vector<1x2x8x32xf32> to vector<2x8x32xf32>
    %c0_3 = arith.constant 0 : index
    %c0_4 = arith.constant 0 : index
    %c0_5 = arith.constant 0 : index
    %c0_6 = arith.constant 0 : index
    %2 = vector.load %arg3[%c0_3, %c0_4, %c0_5, %c0_6] : memref<1x2x8x32xf32, #tpu.memory_space<vmem>>, vector<1x2x8x32xf32>
    %3 = vector.shape_cast %2 : vector<1x2x8x32xf32> to vector<2x8x32xf32>
    %c0_7 = arith.constant 0 : index
    %c0_8 = arith.constant 0 : index
    %c0_9 = arith.constant 0 : index
    %c0_10 = arith.constant 0 : index
    %4 = vector.load %arg5[%c0_7, %c0_8, %c0_9, %c0_10] : memref<1x2x8x1xf32, #tpu.memory_space<vmem>>, vector<1x2x8x1xf32>
    %5 = vector.shape_cast %4 : vector<1x2x8x1xf32> to vector<2x8x1xf32>
    %c0_11 = arith.constant 0 : index
    %c0_12 = arith.constant 0 : index
    %c0_13 = arith.constant 0 : index
    %6 = vector.load %arg4[%c0_11, %c0_12, %c0_13] : memref<1x8x1xf32, #tpu.memory_space<vmem>>, vector<1x8x1xf32>
    %7 = vector.shape_cast %6 : vector<1x8x1xf32> to vector<8x1xf32>
    %8 = vector.broadcast %5 : vector<2x8x1xf32> to vector<2x8x32xf32>
    %9 = arith.mulf %3, %8 : vector<2x8x32xf32>
    %cst = arith.constant dense<0.000000e+00> : vector<2x8x8xf32>
    %10 = tpu.matmul %1, %9, %cst {dimension_numbers = #tpu.dot_dimension_numbers<[2], [2], [1], [1], [0, 0, 0, 1, 1, 1], [0], [0]>} : vector<2x8x32xf32>, vector<2x8x32xf32>, vector<2x8x8xf32> -> vector<2x8x8xf32>
    %11 = vector.shape_cast %7 : vector<8x1xf32> to vector<1x8x1xf32>
    %12 = vector.broadcast %11 : vector<1x8x1xf32> to vector<2x8x8xf32>
    %13 = arith.mulf %10, %12 : vector<2x8x8xf32>
    %c0_14 = arith.constant 0 : index
    %c0_15 = arith.constant 0 : index
    %c0_16 = arith.constant 0 : index
    %c0_17 = arith.constant 0 : index
    %14 = vector.load %arg6[%c0_14, %c0_15, %c0_16, %c0_17] : memref<1x2x8x8xf32, #tpu.memory_space<vmem>>, vector<1x2x8x8xf32>
    %15 = vector.shape_cast %14 : vector<1x2x8x8xf32> to vector<2x8x8xf32>
    %16 = vector.shape_cast %13 : vector<2x8x8xf32> to vector<1x2x8x8xf32>
    tpu.vector_store %arg6[%c0_14, %c0_15, %c0_16, %c0_17], %16 {strides = array<i32>} : memref<1x2x8x8xf32, #tpu.memory_space<vmem>>, vector<1x2x8x8xf32>,
    return
  }
  func.func @transform_0(%arg0: i32, %arg1: i32) -> (i32, i32, i32, i32) {
    %c0_i32 = arith.constant 0 : i32
    %c0_i32_0 = arith.constant 0 : i32
    %c0_i32_1 = arith.constant 0 : i32
    return %arg0, %arg1, %c0_i32, %c0_i32_0 : i32, i32, i32, i32
  }
  func.func @transform_1(%arg0: i32, %arg1: i32) -> (i32, i32, i32, i32) {
    %c0_i32 = arith.constant 0 : i32
    %c0_i32_0 = arith.constant 0 : i32
    %c0_i32_1 = arith.constant 0 : i32
    return %arg0, %arg1, %c0_i32, %c0_i32_0 : i32, i32, i32, i32
  }
  func.func @transform_2(%arg0: i32, %arg1: i32) -> (i32, i32, i32) {
    %c0_i32 = arith.constant 0 : i32
    %c0_i32_0 = arith.constant 0 : i32
    %c0_i32_1 = arith.constant 0 : i32
    return %arg0, %c0_i32, %c0_i32_0 : i32, i32, i32
  }
  func.func @transform_3(%arg0: i32, %arg1: i32) -> (i32, i32, i32, i32) {
    %c0_i32 = arith.constant 0 : i32
    %c0_i32_0 = arith.constant 0 : i32
    %c0_i32_1 = arith.constant 0 : i32
    return %arg0, %arg1, %c0_i32, %c0_i32_0 : i32, i32, i32, i32
  }
  func.func @transform_4(%arg0: i32, %arg1: i32) -> (i32, i32, i32, i32) {
    %c0_i32 = arith.constant 0 : i32
    %c0_i32_0 = arith.constant 0 : i32
    %c0_i32_1 = arith.constant 0 : i32
    return %arg0, %arg1, %c0_i32, %c0_i32_0 : i32, i32, i32, i32
  }
}

</mosaic_0001>

<llo_original>
// kernel: tpu_custom_call.1
$region0: #{tpu_custom_call.1}
  #allocation0 [shape = 'u32[]', space=smem, size = 0x4, offset = 0x4, fixed_abs, tag = 'smem constant byte address 0x4 - core index']
  #allocation1 [shape = 'u32[144,128]{1,0:T(1,128)}', space=vmem, size = 0x12000, scoped, tag = 'internal scratch']
  %s0 = inlined_call_operand.hbm [shape: f32[2,2,8,32], index: 0, kind: input, shape index: {}]
  %s1 = inlined_call_operand.hbm [shape: f32[2,2,8,32], index: 1, kind: input, shape index: {}]
  %s2 = inlined_call_operand.hbm [shape: f32[2,8,1], index: 2, kind: input, shape index: {}]
  %s3 = inlined_call_operand.hbm [shape: f32[2,2,8,1], index: 3, kind: input, shape index: {}]
  %s4 = inlined_call_operand.hbm [shape: f32[2,2,8,8], index: 4, kind: output, shape index: {}]
  %s5 = sld [smem:[#allocation0]]
  $region65: #{tpu_custom_call.1} parent=0
    _
  %s7 = ssub.s32 1, %s5
  %s8 = scalar_select 0, %s7, %s5
  $region1: #{tpu_custom_call.1} parent=0
    #allocation2 [shape = 'u8[16384]{0}', space=vmem, size = 0x4000, scoped, tag = 'input window, operand 0']
    #allocation3 [shape = 's32[2]{0}', space=sflag, size = 0x8, scoped, tag = 'scoped memory for tpu_custom_call.1']
    #allocation4 [shape = 's32[2]{0}', space=sflag, size = 0x8, scoped, tag = 'scoped memory for tpu_custom_call.1']
    #allocation5 [shape = 'u8[16384]{0}', space=vmem, size = 0x4000, scoped, tag = 'input window, operand 1']
    #allocation6 [shape = 's32[2]{0}', space=sflag, size = 0x8, scoped, tag = 'scoped memory for tpu_custom_call.1']
    #allocation7 [shape = 'u8[8192]{0}', space=vmem, size = 0x2000, scoped, tag = 'input window, operand 2']
    #allocation8 [shape = 'u8[16384]{0}', space=vmem, size = 0x4000, scoped, tag = 'input window, operand 3']
    #allocation9 [shape = 's32[2]{0}', space=sflag, size = 0x8, scoped, tag = 'scoped memory for tpu_custom_call.1']
    #allocation10 [shape = 'u8[16384]{0}', space=vmem, size = 0x4000, scoped, tag = 'output window, operand 0']
    %9 = vsyncpa [#allocation3], 0
    %s10 = scalar_lea.sflag [#allocation3], 1
    %11 = vsyncpa %s10, 0
    %12 = vsyncpa [#allocation6], 0
    %s13 = scalar_lea.sflag [#allocation6], 1
    %14 = vsyncpa %s13, 0
    %15 = vsyncpa [#allocation9], 0
    %s16 = scalar_lea.sflag [#allocation9], 1
    %17 = vsyncpa %s16, 0
    %18 = vsyncpa [#allocation4], 0
    %s19 = scalar_lea.sflag [#allocation4], 1
    %20 = vsyncpa %s19, 0
    loop: start=0, step=1, limit=4
    $region2: #{tpu_custom_call.1} parent=1 // loop_pre_header
      _
    $region3: #{tpu_custom_call.1} parent=1 // loop_header
      %s22 = sphi 0, %s26
      %p23 = scmp.ge.s32.totalorder %s22, 4
      %s29 = sphi 0, %s41
      %s30 = sphi 0, %s37
      %s31 = sphi 0, %s29
      %s32 = sphi 0, %s30
      %s33 = sphi 0, %s31
      %s34 = sphi 0, %s32
      %s46 = sphi 0, %s48
      %s49 = sphi 0, %s46
      %s50 = sphi 0, %s49
      %s66 = sphi 0, %s50
      %s74 = sphi 0, %s76
      %s77 = sphi 0, %s74
      %s78 = sphi 0, %s77
      %s94 = sphi 0, %s78
      %s100 = sphi 0, %s102
      %s103 = sphi 0, %s100
      %s104 = sphi 0, %s103
      %s120 = sphi 0, %s104
      %s128 = sphi 0, %s130
      %s131 = sphi 0, %s128
      %s132 = sphi 0, %s131
      %s148 = sphi 0, %s132
      %s156 = sphi 0, %s158
      %s159 = sphi 0, %s156
      %s160 = sphi 0, %s159
      %s176 = sphi 0, %s160
    $region4: #{tpu_custom_call.1} parent=1 // loop_header_branch
      %25 = sbr.rel (%p23) target = $region8
    $region5: #{tpu_custom_call.1} parent=1 // loop_body
      %s27 = ssub.s32 %s22, 1
      %s28 = ssub.s32 %s22, 2
      %s35 = sadd.s32 1, %s30
      %p36 = scmp.ge.s32.totalorder %s35, 1
      %s37 = scalar_select %p36, 0, %s35
      %s38 = sadd.s32 1, %s29
      %s39 = scalar_select %p36, %s38, %s29
      %p40 = scmp.ge.s32.totalorder %s39, 2
      %s41 = scalar_select %p40, 0, %s39
      %s42 = ssub.s32 %s29, %s41
      %s43 = ssub.s32 %s30, %s37
      %s44 = sor.u32 %s42, %s43
      %p45 = scmp.eq.s32.totalorder %s44, 0
      %s47 = sadd.s32 %s46, 1
      %s48 = scalar_select %p45, %s46, %s47
      %p51 = pneg %p45
      %p52 = scmp.eq.s32.totalorder %s22, 1
      %p53 = por %p51, %p52
      %p54 = scmp.ne.s32.totalorder %s46, %s49
      %p55 = scmp.eq.s32.totalorder %s22, 0
      %p56 = por %p54, %p55
      %p57 = scmp.ne.s32.totalorder %s46, %s49
      %p58 = scmp.eq.s32.totalorder %s27, 1
      %p59 = por %p57, %p58
      %p60 = scmp.ne.s32.totalorder %s49, %s50
      %p61 = scmp.eq.s32.totalorder %s27, 0
      %p62 = por %p60, %p61
      %p63 = scmp.ne.s32.totalorder %s49, %s50
      %p64 = scmp.eq.s32.totalorder %s28, 1
      %p65 = por %p63, %p64
      %p67 = scmp.ne.s32.totalorder %s50, %s66
      %p68 = scmp.eq.s32.totalorder %s28, 0
      %p69 = por %p67, %p68
      %s70 = ssub.s32 %s29, %s41
      %s71 = ssub.s32 %s30, %s37
      %s72 = sor.u32 %s70, %s71
      %p73 = scmp.eq.s32.totalorder %s72, 0
      %s75 = sadd.s32 %s74, 1
      %s76 = scalar_select %p73, %s74, %s75
      %p79 = pneg %p73
      %p80 = scmp.eq.s32.totalorder %s22, 1
      %p81 = por %p79, %p80
      %p82 = scmp.ne.s32.totalorder %s74, %s77
      %p83 = scmp.eq.s32.totalorder %s22, 0
      %p84 = por %p82, %p83
      %p85 = scmp.ne.s32.totalorder %s74, %s77
      %p86 = scmp.eq.s32.totalorder %s27, 1
      %p87 = por %p85, %p86
      %p88 = scmp.ne.s32.totalorder %s77, %s78
      %p89 = scmp.eq.s32.totalorder %s27, 0
      %p90 = por %p88, %p89
      %p91 = scmp.ne.s32.totalorder %s77, %s78
      %p92 = scmp.eq.s32.totalorder %s28, 1
      %p93 = por %p91, %p92
      %p95 = scmp.ne.s32.totalorder %s78, %s94
      %p96 = scmp.eq.s32.totalorder %s28, 0
      %p97 = por %p95, %p96
      %s98 = ssub.s32 %s29, %s41
      %p99 = scmp.eq.s32.totalorder %s98, 0
      %s101 = sadd.s32 %s100, 1
      %s102 = scalar_select %p99, %s100, %s101
      %p105 = pneg %p99
      %p106 = scmp.eq.s32.totalorder %s22, 1
      %p107 = por %p105, %p106
      %p108 = scmp.ne.s32.totalorder %s100, %s103
      %p109 = scmp.eq.s32.totalorder %s22, 0
      %p110 = por %p108, %p109
      %p111 = scmp.ne.s32.totalorder %s100, %s103
      %p112 = scmp.eq.s32.totalorder %s27, 1
      %p113 = por %p111, %p112
      %p114 = scmp.ne.s32.totalorder %s103, %s104
      %p115 = scmp.eq.s32.totalorder %s27, 0
      %p116 = por %p114, %p115
      %p117 = scmp.ne.s32.totalorder %s103, %s104
      %p118 = scmp.eq.s32.totalorder %s28, 1
      %p119 = por %p117, %p118
      %p121 = scmp.ne.s32.totalorder %s104, %s120
      %p122 = scmp.eq.s32.totalorder %s28, 0
      %p123 = por %p121, %p122
      %s124 = ssub.s32 %s29, %s41
      %s125 = ssub.s32 %s30, %s37
      %s126 = sor.u32 %s124, %s125
      %p127 = scmp.eq.s32.totalorder %s126, 0
      %s129 = sadd.s32 %s128, 1
      %s130 = scalar_select %p127, %s128, %s129
      %p133 = pneg %p127
      %p134 = scmp.eq.s32.totalorder %s22, 1
      %p135 = por %p133, %p134
      %p136 = scmp.ne.s32.totalorder %s128, %s131
      %p137 = scmp.eq.s32.totalorder %s22, 0
      %p138 = por %p136, %p137
      %p139 = scmp.ne.s32.totalorder %s128, %s131
      %p140 = scmp.eq.s32.totalorder %s27, 1
      %p141 = por %p139, %p140
      %p142 = scmp.ne.s32.totalorder %s131, %s132
      %p143 = scmp.eq.s32.totalorder %s27, 0
      %p144 = por %p142, %p143
      %p145 = scmp.ne.s32.totalorder %s131, %s132
      %p146 = scmp.eq.s32.totalorder %s28, 1
      %p147 = por %p145, %p146
      %p149 = scmp.ne.s32.totalorder %s132, %s148
      %p150 = scmp.eq.s32.totalorder %s28, 0
      %p151 = por %p149, %p150
      %s152 = ssub.s32 %s29, %s41
      %s153 = ssub.s32 %s30, %s37
      %s154 = sor.u32 %s152, %s153
      %p155 = scmp.eq.s32.totalorder %s154, 0
      %s157 = sadd.s32 %s156, 1
      %s158 = scalar_select %p155, %s156, %s157
      %p161 = pneg %p155
      %p162 = scmp.eq.s32.totalorder %s22, 1
      %p163 = por %p161, %p162
      %p164 = scmp.ne.s32.totalorder %s156, %s159
      %p165 = scmp.eq.s32.totalorder %s22, 0
      %p166 = por %p164, %p165
      %p167 = scmp.ne.s32.totalorder %s156, %s159
      %p168 = scmp.eq.s32.totalorder %s27, 1
      %p169 = por %p167, %p168
      %p170 = scmp.ne.s32.totalorder %s159, %s160
      %p171 = scmp.eq.s32.totalorder %s27, 0
      %p172 = por %p170, %p171
      %p173 = scmp.ne.s32.totalorder %s159, %s160
      %p174 = scmp.eq.s32.totalorder %s28, 1
      %p175 = por %p173, %p174
      %p177 = scmp.ne.s32.totalorder %s160, %s176
      %p178 = scmp.eq.s32.totalorder %s28, 0
      %p179 = por %p177, %p178
      %p180 = scmp.le.s32.totalorder 1, %s22
      %p181 = scmp.lt.s32.totalorder %s22, 3
      %p182 = pnand %p180, %p181
      %p183 = pneg %p182
      // Predicated region
      $region9: #{tpu_custom_call.1} parent=5 // pred_check
        _
      $region10: #{tpu_custom_call.1} parent=5 // pred_check_branch
        %185 = sbr.rel (%p182) target = $region12
      $region11: #{tpu_custom_call.1} parent=5 // pred_region
        %s186 = ssub.s32 %s22, 1
      $region12: #{tpu_custom_call.1} parent=5 // pred_fallthru
        _
      %p187 = scmp.lt.s32.totalorder %s22, 2
      // Predicated region
      $region13: #{tpu_custom_call.1} parent=5 // pred_check
        %p188 = pneg %p187
      $region14: #{tpu_custom_call.1} parent=5 // pred_check_branch
        %190 = sbr.rel (%p188) target = $region16
      $region15: #{tpu_custom_call.1} parent=5 // pred_region
        // Predicated region
        $region17: #{tpu_custom_call.1} parent=15 // pred_check
          %p191 = pneg %p56
        $region18: #{tpu_custom_call.1} parent=15 // pred_check_branch
          %193 = sbr.rel (%p191) target = $region20
        $region19: #{tpu_custom_call.1} parent=15 // pred_region
          %s194 = sand.u32 %s46, 1
          %s195 = scalar_lea.sflag [#allocation3], %s194
          %s196 = sand.u32 %s46, 1
          %s197 = smul.addr %s196, 16
          %s198 = scalar_lea.vmem [#allocation2], %s197
          %s199 = smul.u32 2, %s30
          %s201 = ssub.s32 256, 256
          %202 = vsyncadd %s195, %s201
          %s203 = smul.addr %s29, 2
          %s204 = sadd.s32 %s199, %s203
          %s205 = smul.addr %s204, 128
          %s206 = scalar_lea.hbm %s0, %s205
          %s207 = sshll.u32 %s198, 4
          %s208 = int_to_ptr.vmem [resolvable:$true] %s207
          %213 = dma.hbm_to_vmem [thread:$0]  %s206, 256, %s208, %s195, 128, 128, 8
        $region20: #{tpu_custom_call.1} parent=15 // pred_fallthru
          _
        // Predicated region
        $region21: #{tpu_custom_call.1} parent=15 // pred_check
          %p214 = pneg %p84
        $region22: #{tpu_custom_call.1} parent=15 // pred_check_branch
          %216 = sbr.rel (%p214) target = $region24
        $region23: #{tpu_custom_call.1} parent=15 // pred_region
          %s217 = sand.u32 %s22, 1
          %s218 = scalar_lea.sflag [#allocation6], %s217
          %s219 = sand.u32 %s74, 1
          %s220 = smul.addr %s219, 16
          %s221 = scalar_lea.vmem [#allocation5], %s220
          %s222 = smul.u32 2, %s30
          %s224 = ssub.s32 256, 256
          %225 = vsyncadd %s218, %s224
          %s226 = smul.addr %s29, 2
          %s227 = sadd.s32 %s222, %s226
          %s228 = smul.addr %s227, 128
          %s229 = scalar_lea.hbm %s1, %s228
          %s230 = sshll.u32 %s221, 4
          %s231 = int_to_ptr.vmem [resolvable:$true] %s230
          %236 = dma.hbm_to_vmem [thread:$0]  %s229, 256, %s231, %s218, 128, 128, 8
        $region24: #{tpu_custom_call.1} parent=15 // pred_fallthru
          _
        // Predicated region
        $region25: #{tpu_custom_call.1} parent=15 // pred_check
          %p237 = pneg %p110
        $region26: #{tpu_custom_call.1} parent=15 // pred_check_branch
          %239 = sbr.rel (%p237) target = $region28
        $region27: #{tpu_custom_call.1} parent=15 // pred_region
          %s240 = sand.u32 %s22, 1
          %s241 = scalar_lea.sflag [#allocation6], %s240
          %s242 = sand.u32 %s100, 1
          %s243 = smul.addr %s242, 8
          %s244 = scalar_lea.vmem [#allocation7], %s243
          %s246 = ssub.s32 128, 128
          %247 = vsyncadd %s241, %s246
          %s248 = smul.addr %s29, 128
          %s249 = scalar_lea.hbm %s2, %s248
          %s251 = sshll.u32 %s244, 4
          %s252 = int_to_ptr.vmem [resolvable:$true] %s251
          %254 = dma.hbm_to_vmem [thread:$0]  %s249, 128, %s252, %s241
        $region28: #{tpu_custom_call.1} parent=15 // pred_fallthru
          _
        // Predicated region
        $region29: #{tpu_custom_call.1} parent=15 // pred_check
          %p255 = pneg %p138
        $region30: #{tpu_custom_call.1} parent=15 // pred_check_branch
          %257 = sbr.rel (%p255) target = $region32
        $region31: #{tpu_custom_call.1} parent=15 // pred_region
          %s258 = sand.u32 %s128, 1
          %s259 = scalar_lea.sflag [#allocation9], %s258
          %s260 = sand.u32 %s128, 1
          %s261 = smul.addr %s260, 16
          %s262 = scalar_lea.vmem [#allocation8], %s261
          %s263 = smul.u32 2, %s30
          %s265 = ssub.s32 256, 256
          %266 = vsyncadd %s259, %s265
          %s267 = smul.addr %s29, 2
          %s268 = sadd.s32 %s263, %s267
          %s269 = smul.addr %s268, 128
          %s270 = scalar_lea.hbm %s3, %s269
          %s271 = sshll.u32 %s262, 4
          %s272 = int_to_ptr.vmem [resolvable:$true] %s271
          %277 = dma.hbm_to_vmem [thread:$0]  %s270, 256, %s272, %s259, 128, 128, 8
        $region32: #{tpu_custom_call.1} parent=15 // pred_fallthru
          _
      $region16: #{tpu_custom_call.1} parent=5 // pred_fallthru
        _
      %p278 = scmp.le.s32.totalorder 1, %s22
      %p279 = scmp.lt.s32.totalorder %s22, 3
      %p280 = pnand %p278, %p279
      %p281 = pneg %p280
      // Predicated region
      $region33: #{tpu_custom_call.1} parent=5 // pred_check
        _
      $region34: #{tpu_custom_call.1} parent=5 // pred_check_branch
        %283 = sbr.rel (%p280) target = $region36
      $region35: #{tpu_custom_call.1} parent=5 // pred_region
        %s284 = ssub.s32 %s22, 1
        %s285 = sand.u32 %s49, 1
        %s286 = scalar_lea.sflag [#allocation3], %s285
        %s287 = sand.u32 %s49, 1
        %s288 = smul.addr %s287, 16
        %s289 = scalar_lea.vmem [#allocation2], %s288
        // Predicated region
        $region37: #{tpu_custom_call.1} parent=35 // pred_check
          %p290 = pneg %p62
        $region38: #{tpu_custom_call.1} parent=35 // pred_check_branch
          %292 = sbr.rel (%p290) target = $region40
        $region39: #{tpu_custom_call.1} parent=35 // pred_region
          %293 = dma.done %s286, 256
        $region40: #{tpu_custom_call.1} parent=35 // pred_fallthru
          _
        %s294 = sand.u32 %s27, 1
        %s295 = scalar_lea.sflag [#allocation6], %s294
        %s296 = sand.u32 %s77, 1
        %s297 = smul.addr %s296, 16
        %s298 = scalar_lea.vmem [#allocation5], %s297
        // Predicated region
        $region41: #{tpu_custom_call.1} parent=35 // pred_check
          %p299 = pneg %p90
        $region42: #{tpu_custom_call.1} parent=35 // pred_check_branch
          %301 = sbr.rel (%p299) target = $region44
        $region43: #{tpu_custom_call.1} parent=35 // pred_region
          %302 = dma.done %s295, 256
        $region44: #{tpu_custom_call.1} parent=35 // pred_fallthru
          _
        %s303 = sand.u32 %s27, 1
        %s304 = scalar_lea.sflag [#allocation6], %s303
        %s305 = sand.u32 %s103, 1
        %s306 = smul.addr %s305, 8
        %s307 = scalar_lea.vmem [#allocation7], %s306
        // Predicated region
        $region45: #{tpu_custom_call.1} parent=35 // pred_check
          %p308 = pneg %p116
        $region46: #{tpu_custom_call.1} parent=35 // pred_check_branch
          %310 = sbr.rel (%p308) target = $region48
        $region47: #{tpu_custom_call.1} parent=35 // pred_region
          %311 = dma.done %s304, 128
        $region48: #{tpu_custom_call.1} parent=35 // pred_fallthru
          _
        %s312 = sand.u32 %s131, 1
        %s313 = scalar_lea.sflag [#allocation9], %s312
        %s314 = sand.u32 %s131, 1
        %s315 = smul.addr %s314, 16
        %s316 = scalar_lea.vmem [#allocation8], %s315
        // Predicated region
        $region49: #{tpu_custom_call.1} parent=35 // pred_check
          %p317 = pneg %p144
        $region50: #{tpu_custom_call.1} parent=35 // pred_check_branch
          %319 = sbr.rel (%p317) target = $region52
        $region51: #{tpu_custom_call.1} parent=35 // pred_region
          %320 = dma.done %s313, 256
        $region52: #{tpu_custom_call.1} parent=35 // pred_fallthru
          _
        %s321 = sand.u32 %s49, 1
        %s322 = scalar_lea.sflag [#allocation3], %s321
        %s323 = sand.u32 %s49, 1
        %s324 = smul.addr %s323, 16
        %s325 = scalar_lea.vmem [#allocation2], %s324
        %p326 = pneg %p62
        %p327 = pneg %p59
        %s328 = sand.u32 %s27, 1
        %s329 = scalar_lea.sflag [#allocation6], %s328
        %s330 = sand.u32 %s77, 1
        %s331 = smul.addr %s330, 16
        %s332 = scalar_lea.vmem [#allocation5], %s331
        %p333 = pneg %p90
        %p334 = pneg %p87
        %s335 = sand.u32 %s27, 1
        %s336 = scalar_lea.sflag [#allocation6], %s335
        %s337 = sand.u32 %s103, 1
        %s338 = smul.addr %s337, 8
        %s339 = scalar_lea.vmem [#allocation7], %s338
        %p340 = pneg %p116
        %p341 = pneg %p113
        %s342 = sand.u32 %s131, 1
        %s343 = scalar_lea.sflag [#allocation9], %s342
        %s344 = sand.u32 %s131, 1
        %s345 = smul.addr %s344, 16
        %s346 = scalar_lea.vmem [#allocation8], %s345
        %p347 = pneg %p144
        %p348 = pneg %p141
        %p349 = pneg %p172
        %p350 = pneg %p169
        %s351 = sand.u32 %s159, 1
        %s352 = scalar_lea.sflag [#allocation4], %s351
        %s353 = sand.u32 %s159, 1
        %s354 = smul.addr %s353, 16
        %s355 = scalar_lea.vmem [#allocation10], %s354
        %s356 = smul.u32 2, %s32
        %s357 = smul.u32 2, %s32
        %s358 = smul.u32 2, %s32
        %s359 = smul.u32 2, %s32
        %v360 = vld [vmem:[%s289] sm:$0xff]
        %v361 = vld [vmem:[%s289 + $0x8] sm:$0xff]
        %v362 = vld [vmem:[%s298] sm:$0xff]
        %v363 = vld [vmem:[%s298 + $0x8] sm:$0xff]
        %v364 = vld [vmem:[%s316] sm:$0xff]
        %v365 = vld [vmem:[%s316 + $0x8] sm:$0xff]
        %v366 = vld [vmem:[%s307] sm:$0xff]
        %368 = vset.pattern.permute.xlu0 0
        %369 = vperm.xlu0 %368, %v364
        %v370 = vpop.permute.xlu0 %369
        %373 = vset.pattern.permute.xlu0 0
        %374 = vperm.xlu0 %373, %v365
        %v375 = vpop.permute.xlu0 %374
        %v377 = vmul.f32 %v362, %v370
        %v378 = vmul.f32 %v363, %v375
        %vm379 = vcmask 261120
        %v381 = vsel %vm379, %v360, 0
        %v384 = vsel %vm379, %v377, 0
        %386 = vmatprep.subr.mxu0 0.0
        %387 = vmatpush1.xpose.msra.mxu0 %v384
        %388 = vmatprep.subr.mxu0 0.0
        %389 = vmatpush1.xpose.msra.mxu0 0.0
        %390 = vmatprep.subr.mxu0 0.0
        %391 = vmatpush1.xpose.msra.mxu0 0.0
        %392 = vmatprep.subr.mxu0 0.0
        %393 = vmatpush1.xpose.msra.mxu0 0.0
        %394 = vmatprep.subr.mxu0 0.0
        %395 = vmatpush1.xpose.msra.mxu0 0.0
        %396 = vmatprep.subr.mxu0 0.0
        %397 = vmatpush1.xpose.msra.mxu0 0.0
        %398 = vmatprep.subr.mxu0 0.0
        %399 = vmatpush1.xpose.msra.mxu0 0.0
        %400 = vmatprep.subr.mxu0 0.0
        %401 = vmatpush1.xpose.msra.mxu0 0.0
        %402 = vmatprep.subr.mxu0 0.0
        %403 = vmatpush1.xpose.msra.mxu0 0.0
        %404 = vmatprep.subr.mxu0 0.0
        %405 = vmatpush1.xpose.msra.mxu0 0.0
        %406 = vmatprep.subr.mxu0 0.0
        %407 = vmatpush1.xpose.msra.mxu0 0.0
        %408 = vmatprep.subr.mxu0 0.0
        %409 = vmatpush1.xpose.msra.mxu0 0.0
        %410 = vmatprep.subr.mxu0 0.0
        %411 = vmatpush1.xpose.msra.mxu0 0.0
        %412 = vmatprep.subr.mxu0 0.0
        %413 = vmatpush1.xpose.msra.mxu0 0.0
        %414 = vmatprep.subr.mxu0 0.0
        %415 = vmatpush1.xpose.msra.mxu0 0.0
        %416 = vmatprep.subr.mxu0 0.0
        %417 = vmatpush1.xpose.msra.mxu0 0.0
        %418 = vmatprep.subr.mxu0 0.0
        %419 = vmatpush1.xpose.msra.mxu0 0.0
        %420 = vmatprep.subr.mxu0 0.0
        %421 = vmatpush1.xpose.msra.mxu0 0.0
        %422 = vmatprep.subr.mxu0 0.0
        %423 = vmatpush1.xpose.msra.mxu0 0.0
        %424 = vmatprep.subr.mxu0 0.0
        %425 = vmatpush1.xpose.msra.mxu0 0.0
        %426 = vmatprep.subr.mxu0 0.0
        %427 = vmatpush1.xpose.msra.mxu0 0.0
        %428 = vmatprep.subr.mxu0 0.0
        %429 = vmatpush1.xpose.msra.mxu0 0.0
        %430 = vmatprep.subr.mxu0 0.0
        %431 = vmatpush1.xpose.msra.mxu0 0.0
        %432 = vmatprep.subr.mxu0 0.0
        %433 = vmatpush1.xpose.msra.mxu0 0.0
        %434 = vmatprep.subr.mxu0 0.0
        %435 = vmatpush1.xpose.msra.mxu0 0.0
        %436 = vmatprep.subr.mxu0 0.0
        %437 = vmatpush1.xpose.msra.mxu0 0.0
        %438 = vmatprep.subr.mxu0 0.0
        %439 = vmatpush1.xpose.msra.mxu0 0.0
        %440 = vmatprep.subr.mxu0 0.0
        %441 = vmatpush1.xpose.msra.mxu0 0.0
        %442 = vmatprep.subr.mxu0 0.0
        %443 = vmatpush1.xpose.msra.mxu0 0.0
        %444 = vmatprep.subr.mxu0 0.0
        %445 = vmatpush1.xpose.msra.mxu0 0.0
        %446 = vmatprep.subr.mxu0 0.0
        %447 = vmatpush1.xpose.msra.mxu0 0.0
        %448 = vmatprep.subr.mxu0 0.0
        %449 = vmatpush1.xpose.msra.mxu0 0.0
        %450 = vmatprep.mubr.f32.mxu0 0.0
        %451 = vmatmul.mubr.f32.gmra.mrb[0].mxu0 %v381
        %v452 = vpop.f32.mrb[0].mxu0
        %v453 = vadd.f32 0.0, %v452
        %v454 = vpop.f32.mrb[0].mxu0
        %455 = vdwg.mxu0
        %v457 = vsel %vm379, %v361, 0
        %v460 = vsel %vm379, %v378, 0
        %462 = vmatprep.subr.mxu0 0.0
        %463 = vmatpush1.xpose.msra.mxu0 %v460
        %464 = vmatprep.subr.mxu0 0.0
        %465 = vmatpush1.xpose.msra.mxu0 0.0
        %466 = vmatprep.subr.mxu0 0.0
        %467 = vmatpush1.xpose.msra.mxu0 0.0
        %468 = vmatprep.subr.mxu0 0.0
        %469 = vmatpush1.xpose.msra.mxu0 0.0
        %470 = vmatprep.subr.mxu0 0.0
        %471 = vmatpush1.xpose.msra.mxu0 0.0
        %472 = vmatprep.subr.mxu0 0.0
        %473 = vmatpush1.xpose.msra.mxu0 0.0
        %474 = vmatprep.subr.mxu0 0.0
        %475 = vmatpush1.xpose.msra.mxu0 0.0
        %476 = vmatprep.subr.mxu0 0.0
        %477 = vmatpush1.xpose.msra.mxu0 0.0
        %478 = vmatprep.subr.mxu0 0.0
        %479 = vmatpush1.xpose.msra.mxu0 0.0
        %480 = vmatprep.subr.mxu0 0.0
        %481 = vmatpush1.xpose.msra.mxu0 0.0
        %482 = vmatprep.subr.mxu0 0.0
        %483 = vmatpush1.xpose.msra.mxu0 0.0
        %484 = vmatprep.subr.mxu0 0.0
        %485 = vmatpush1.xpose.msra.mxu0 0.0
        %486 = vmatprep.subr.mxu0 0.0
        %487 = vmatpush1.xpose.msra.mxu0 0.0
        %488 = vmatprep.subr.mxu0 0.0
        %489 = vmatpush1.xpose.msra.mxu0 0.0
        %490 = vmatprep.subr.mxu0 0.0
        %491 = vmatpush1.xpose.msra.mxu0 0.0
        %492 = vmatprep.subr.mxu0 0.0
        %493 = vmatpush1.xpose.msra.mxu0 0.0
        %494 = vmatprep.subr.mxu0 0.0
        %495 = vmatpush1.xpose.msra.mxu0 0.0
        %496 = vmatprep.subr.mxu0 0.0
        %497 = vmatpush1.xpose.msra.mxu0 0.0
        %498 = vmatprep.subr.mxu0 0.0
        %499 = vmatpush1.xpose.msra.mxu0 0.0
        %500 = vmatprep.subr.mxu0 0.0
        %501 = vmatpush1.xpose.msra.mxu0 0.0
        %502 = vmatprep.subr.mxu0 0.0
        %503 = vmatpush1.xpose.msra.mxu0 0.0
        %504 = vmatprep.subr.mxu0 0.0
        %505 = vmatpush1.xpose.msra.mxu0 0.0
        %506 = vmatprep.subr.mxu0 0.0
        %507 = vmatpush1.xpose.msra.mxu0 0.0
        %508 = vmatprep.subr.mxu0 0.0
        %509 = vmatpush1.xpose.msra.mxu0 0.0
        %510 = vmatprep.subr.mxu0 0.0
        %511 = vmatpush1.xpose.msra.mxu0 0.0
        %512 = vmatprep.subr.mxu0 0.0
        %513 = vmatpush1.xpose.msra.mxu0 0.0
        %514 = vmatprep.subr.mxu0 0.0
        %515 = vmatpush1.xpose.msra.mxu0 0.0
        %516 = vmatprep.subr.mxu0 0.0
        %517 = vmatpush1.xpose.msra.mxu0 0.0
        %518 = vmatprep.subr.mxu0 0.0
        %519 = vmatpush1.xpose.msra.mxu0 0.0
        %520 = vmatprep.subr.mxu0 0.0
        %521 = vmatpush1.xpose.msra.mxu0 0.0
        %522 = vmatprep.subr.mxu0 0.0
        %523 = vmatpush1.xpose.msra.mxu0 0.0
        %524 = vmatprep.subr.mxu0 0.0
        %525 = vmatpush1.xpose.msra.mxu0 0.0
        %526 = vmatprep.mubr.f32.mxu0 0.0
        %527 = vmatmul.mubr.f32.gmra.mrb[0].mxu0 %v457
        %v528 = vpop.f32.mrb[0].mxu0
        %v529 = vadd.f32 0.0, %v528
        %v530 = vpop.f32.mrb[0].mxu0
        %531 = vdwg.mxu0
        %533 = vset.pattern.permute.xlu0 0
        %534 = vperm.xlu0 %533, %v366
        %v535 = vpop.permute.xlu0 %534
        %v537 = vmul.f32 %v453, %v535
        %v538 = vmul.f32 %v529, %v535
        %vm539 = vcmask 64512
        %540 = vst.msk [vmem:[%s355] sm:$0xff] %vm539, %v537
        %541 = vst.msk [vmem:[%s355 + $0x8] sm:$0xff] %vm539, %v538
        %s542 = sand.u32 %s159, 1
        %s543 = scalar_lea.sflag [#allocation4], %s542
        %s544 = sand.u32 %s159, 1
        %s545 = smul.addr %s544, 16
        %s546 = scalar_lea.vmem [#allocation10], %s545
        // Predicated region
        $region53: #{tpu_custom_call.1} parent=35 // pred_check
          %p547 = pneg %p169
        $region54: #{tpu_custom_call.1} parent=35 // pred_check_branch
          %549 = sbr.rel (%p547) target = $region56
        $region55: #{tpu_custom_call.1} parent=35 // pred_region
          %s550 = smul.u32 2, %s32
          %s552 = ssub.s32 256, 256
          %553 = vsyncadd %s543, %s552
          %s554 = smul.addr %s31, 2
          %s555 = sadd.s32 %s550, %s554
          %s556 = smul.addr %s555, 128
          %s557 = scalar_lea.hbm %s4, %s556
          %s558 = sshll.u32 %s546, 4
          %s559 = int_to_ptr.vmem [resolvable:$true] %s558
          %564 = dma.vmem_to_hbm [thread:$0]  %s559, 256, %s557, %s543, 128, 128, 8
        $region56: #{tpu_custom_call.1} parent=35 // pred_fallthru
          _
      $region36: #{tpu_custom_call.1} parent=5 // pred_fallthru
        _
      %p565 = scmp.le.s32.totalorder 2, %s22
      // Predicated region
      $region57: #{tpu_custom_call.1} parent=5 // pred_check
        %p566 = pneg %p565
      $region58: #{tpu_custom_call.1} parent=5 // pred_check_branch
        %568 = sbr.rel (%p566) target = $region60
      $region59: #{tpu_custom_call.1} parent=5 // pred_region
        %s569 = ssub.s32 %s22, 2
        // Predicated region
        $region61: #{tpu_custom_call.1} parent=59 // pred_check
          %p570 = pneg %p175
        $region62: #{tpu_custom_call.1} parent=59 // pred_check_branch
          %572 = sbr.rel (%p570) target = $region64
        $region63: #{tpu_custom_call.1} parent=59 // pred_region
          %s573 = sand.u32 %s160, 1
          %s574 = scalar_lea.sflag [#allocation4], %s573
          %s575 = sand.u32 %s160, 1
          %s576 = smul.addr %s575, 16
          %s577 = scalar_lea.vmem [#allocation10], %s576
          %578 = dma.done %s574, 256
        $region64: #{tpu_custom_call.1} parent=59 // pred_fallthru
          _
      $region60: #{tpu_custom_call.1} parent=5 // pred_fallthru
        _
    $region6: #{tpu_custom_call.1} parent=1 // loop_footer
      %s26 = sadd.s32 1, %s22
    $region7: #{tpu_custom_call.1} parent=1 // loop_footer_branch
      %21 = sbr.rel target = $region3
    $region8: #{tpu_custom_call.1} parent=1 // loop_exit
      _
    %579 = vsyncpa [#allocation3], 1
    %s580 = scalar_lea.sflag [#allocation3], 1
    %581 = vsyncpa %s580, 1
    %582 = vsyncpa [#allocation6], 1
    %s583 = scalar_lea.sflag [#allocation6], 1
    %584 = vsyncpa %s583, 1
    %585 = vsyncpa [#allocation9], 1
    %s586 = scalar_lea.sflag [#allocation9], 1
    %587 = vsyncpa %s586, 1
    %588 = vsyncpa [#allocation4], 1
    %s589 = scalar_lea.sflag [#allocation4], 1
    %590 = vsyncpa %s589, 1

</llo_original>
